<compile_context>
chip_gen: v7x
topology: tpu7x:2x2x1
jax: 0.10.0
libtpu: 0.0.40
codegen_flags: <defaults>
</compile_context>

<pallas_src>
import jax
import jax.numpy as jnp
from jax.experimental import pallas as pl
from jax.experimental.pallas import tpu as pltpu

NEG_SLOPE = 0.01   # nn.LeakyReLU() default negative_slope
BN_EPS = 1e-5      # nn.BatchNorm2d default eps
WIN = 16           # 4x4 pooling window positions


def _round_up(a, b):
    return -(-a // b) * b


# ----------------------------------------------------------------------------
# Kernel: x block (1, Cin, 16*tm) [compute dtype], w (Cout, Cin), s/b (Cout, 1) f32,
# output block (Cout, tm) f32 (lane-dense single store).
# ----------------------------------------------------------------------------
def _make_kernel(use_mxu, nwin=WIN):
    def kernel(x_ref, w_ref, s_ref, b_ref, o_ref):
        cout, tm = o_ref.shape
        if use_mxu:
            # One fused MXU matmul over all 16 window positions of this tile.
            y = jnp.dot(w_ref[...], x_ref[0],
                        preferred_element_type=jnp.float32)        # (Cout, 16*tm)
        else:
            # Small Cout: broadcast-FMA on the VPU, exact f32 weights.
            cin = x_ref.shape[1]
            y = w_ref[:, 0:1] * x_ref[0, 0:1, :]                   # f32 * bf16 -> f32
            for ci in range(1, cin):
                y = y + w_ref[:, ci:ci + 1] * x_ref[0, ci:ci + 1, :]
        # BN scale/shift (f32) with the AvgPool 1/16 pre-folded host-side.
        y = y * s_ref[...] + b_ref[...]
        y = jnp.where(y > 0, y, NEG_SLOPE * y)                     # LeakyReLU
        # AvgPool2d(4,4): sum the 16 window positions via lane-tile-aligned slices
        # (tm is a multiple of 128 -> pure vreg selection, no relayout).
        acc = y[:, 0:tm]
        for p in range(1, nwin):
            acc = acc + y[:, p * tm:(p + 1) * tm]
        o_ref[...] = acc.astype(o_ref.dtype)                       # single full store
    return kernel


def _pick_tile(m, cin, cout, budget, nwin=WIN):
    """Pick tm (multiple of 128) from the VMEM budget, keep >=2 grid steps when
    possible, and rebalance so padding stays < 128*n_tiles columns."""
    m128 = _round_up(m, 128)
    # double-buffered bf16 x block + 2x f32 (Cout, 16*tm) intermediate + 2x f32 out
    per_pos = 2 * (cin * nwin * 2) + 2 * (cout * nwin * 4) + 2 * (cout * 4)
    tm = max(128, (budget // per_pos) // 128 * 128)
    tm = min(tm, m128)
    if m128 >= 256:                      # >=2 grid steps: megacore sharding + pipelining
        tm = min(tm, max(128, (m128 // 2) // 128 * 128))
    n_tiles = -(-m128 // tm)
    tm = _round_up(-(-m128 // n_tiles), 128)   # even split; pad bounded
    return tm, n_tiles, n_tiles * tm


# ----------------------------------------------------------------------------
# Wrapper: fold train-mode BatchNorm into per-channel scale/bias, one relayout,
# dispatch one pallas_call.
# ----------------------------------------------------------------------------
def downsample_forward(x, conv_w, conv_b, gamma, beta, eps=BN_EPS,
                       compute_dtype=jnp.bfloat16, vpu_max_cout=8):
    """Forward of DownSample: Conv2d(1x1) -> BatchNorm2d (training batch stats)
    -> LeakyReLU -> AvgPool2d(4,4).  x is NCHW float32, output is NCHW float32."""
    N, Cin, H, W = x.shape
    Cout = conv_w.shape[0]
    assert H % 4 == 0 and W % 4 == 0, "AvgPool2d(4,4) needs H, W divisible by 4"
    Ho, Wo = H // 4, W // 4
    M = N * Ho * Wo

    x = x.astype(jnp.float32)
    wc = conv_w.reshape(Cout, Cin).astype(jnp.float32)
    conv_b = conv_b.astype(jnp.float32)
    gamma = gamma.astype(jnp.float32)
    beta = beta.astype(jnp.float32)

    # --- BN batch statistics of the conv output, from the ORIGINAL layout of x ---
    # (layout independent -> no extra read of the relayouted copy; Gram form avoids
    # materializing a centered copy; keep f32 HIGHEST and clamp var >= 0.)
    npix = N * H * W
    mu_x = jnp.mean(x, axis=(0, 2, 3))
    gram = jnp.einsum("nchw,ndhw->cd", x, x,
                      precision=jax.lax.Precision.HIGHEST) / npix
    cov_x = gram - jnp.outer(mu_x, mu_x)
    mu_y = wc @ mu_x + conv_b
    var_y = jnp.maximum(jnp.sum((wc @ cov_x) * wc, axis=1), 0.0)
    scale = gamma / jnp.sqrt(var_y + eps)

    # Fold BN affine and the AvgPool 1/16 (LeakyReLU is positively homogeneous, so
    # (1/16)*leaky(z) == leaky(z/16)) into per-channel scale/bias applied in f32.
    s_k = (scale / 16.0).reshape(Cout, 1)
    b_k = ((scale * (conv_b - mu_y) + beta) / 16.0).reshape(Cout, 1)

    use_mxu = Cout > vpu_max_cout          # VPU work/elem ~ Cout FMAs -> gate on Cout
    wk = wc.astype(compute_dtype) if use_mxu else wc   # bf16 MXU weights / exact f32 VPU

    # --- generation-aware VMEM budget & tile size ---
    try:
        vmem_cap = int(pltpu.get_tpu_info().vmem_capacity_bytes)
    except Exception:
        vmem_cap = 64 * 2**20              # conservative fallback (v7x-sized)
    budget = min(max(vmem_cap // 6, 8 * 2**20), 24 * 2**20)
    vmem_limit = int(min(vmem_cap // 2, 64 * 2**20))

    tm, n_tiles, m_pad = _pick_tile(M, Cin, Cout, budget)

    # --- single window-major relayout with the bf16 cast fused in ---
    # xw[t, c, w*tm + j] = x[n, c, 4*ho + wh, 4*wo + ww], w = 4*wh + ww, t*tm + j = flat(n,ho,wo)
    xw = x.astype(compute_dtype).reshape(N, Cin, Ho, 4, Wo, 4)
    xw = xw.transpose(1, 3, 5, 0, 2, 4).reshape(Cin, WIN, M)
    if m_pad != M:
        xw = jnp.pad(xw, ((0, 0), (0, 0), (0, m_pad - M)))   # bounded (<128*n_tiles cols)
    xw = xw.reshape(Cin, WIN, n_tiles, tm).transpose(2, 0, 1, 3)
    xw = xw.reshape(n_tiles, Cin, WIN * tm)

    out = pl.pallas_call(
        _make_kernel(use_mxu),
        out_shape=jax.ShapeDtypeStruct((Cout, m_pad), jnp.float32),
        grid=(n_tiles,),
        in_specs=[
            pl.BlockSpec((1, Cin, WIN * tm), lambda i: (i, 0, 0)),   # lane-dense x tile
            pl.BlockSpec((Cout, Cin), lambda i: (0, 0)),             # weights (resident)
            pl.BlockSpec((Cout, 1), lambda i: (0, 0)),               # BN scale (f32)
            pl.BlockSpec((Cout, 1), lambda i: (0, 0)),               # BN bias  (f32)
        ],
        out_specs=pl.BlockSpec((Cout, tm), lambda i: (0, i)),        # lane-dense store
        compiler_params=pltpu.CompilerParams(
            dimension_semantics=("parallel",),
            vmem_limit_bytes=vmem_limit),
    )(xw, wk, s_k, b_k)

    return out[:, :M].reshape(Cout, N, Ho, Wo).transpose(1, 0, 2, 3)


# ----------------------------------------------------------------------------
# Pure-JAX reference matching the PyTorch module (train-mode BN).
# ----------------------------------------------------------------------------
def _reference(x, conv_w, conv_b, gamma, beta, eps=BN_EPS):
    N, Cin, H, W = x.shape
    Cout = conv_w.shape[0]
    wc = conv_w.reshape(Cout, Cin)
    y = jnp.einsum("oc,nchw->nohw", wc, x,
                   precision=jax.lax.Precision.HIGHEST) + conv_b[None, :, None, None]
    mu = y.mean(axis=(0, 2, 3))
    var = y.var(axis=(0, 2, 3))  # biased, as torch BN uses for normalization
    ybn = (y - mu[None, :, None, None]) / jnp.sqrt(var + eps)[None, :, None, None]
    ybn = ybn * gamma[None, :, None, None] + beta[None, :, None, None]
    act = jnp.where(ybn > 0, ybn, NEG_SLOPE * ybn)
    Ho, Wo = H // 4, W // 4
    return act.reshape(N, Cout, Ho, 4, Wo, 4).mean(axis=(3, 5))


if __name__ == "__main__":
    key = jax.random.PRNGKey(0)
    ks = jax.random.split(key, 10)
    fwd = jax.jit(downsample_forward)

    # --- test 1: small channels -> lane-dense VPU path ---
    N, Cin, Cout, H, W = 2, 4, 8, 16, 16
    x = jax.random.normal(ks[0], (N, Cin, H, W), jnp.float32)
    conv_w = 0.3 * jax.random.normal(ks[1], (Cout, Cin, 1, 1), jnp.float32)
    conv_b = 0.1 * jax.random.normal(ks[2], (Cout,), jnp.float32)
    gamma = 1.0 + 0.1 * jax.random.normal(ks[3], (Cout,), jnp.float32)
    beta = 0.1 * jax.random.normal(ks[4], (Cout,), jnp.float32)

    out = jax.block_until_ready(fwd(x, conv_w, conv_b, gamma, beta))
    assert out.shape == (N, Cout, H // 4, W // 4), out.shape
    ref = _reference(x, conv_w, conv_b, gamma, beta)
    # bf16 kernel inputs -> allow ~1e-2 tolerance (f32 accumulation inside).
    if not jnp.allclose(out, ref, atol=2e-2, rtol=2e-2):
        raise AssertionError(
            f"VPU-path mismatch, max abs err {float(jnp.max(jnp.abs(out - ref)))}")

    # --- test 2: larger channels -> fused single-dot MXU path ---
    N2, Cin2, Cout2, H2, W2 = 1, 16, 32, 8, 8
    x2 = jax.random.normal(ks[5], (N2, Cin2, H2, W2), jnp.float32)
    conv_w2 = 0.2 * jax.random.normal(ks[6], (Cout2, Cin2, 1, 1), jnp.float32)
    conv_b2 = 0.1 * jax.random.normal(ks[7], (Cout2,), jnp.float32)
    gamma2 = 1.0 + 0.1 * jax.random.normal(ks[8], (Cout2,), jnp.float32)
    beta2 = 0.1 * jax.random.normal(ks[9], (Cout2,), jnp.float32)

    out2 = jax.block_until_ready(fwd(x2, conv_w2, conv_b2, gamma2, beta2))
    assert out2.shape == (N2, Cout2, H2 // 4, W2 // 4), out2.shape
    ref2 = _reference(x2, conv_w2, conv_b2, gamma2, beta2)
    if not jnp.allclose(out2, ref2, atol=2e-2, rtol=2e-2):
        raise AssertionError(
            f"MXU-path mismatch, max abs err {float(jnp.max(jnp.abs(out2 - ref2)))}")

    print("KERNEL_OK")
</pallas_src>

<mosaic_0001>
module attributes {stable_mosaic.version = 11 : i64} {
  func.func @kernel(%arg0: i32, %arg1: memref<1x4x2048xbf16, #tpu.memory_space<vmem>>, %arg2: memref<8x4xf32, #tpu.memory_space<vmem>>, %arg3: memref<8x1xf32, #tpu.memory_space<vmem>>, %arg4: memref<8x1xf32, #tpu.memory_space<vmem>>, %arg5: memref<8x128xf32, #tpu.memory_space<vmem>>) attributes {dimension_semantics = [#tpu.dimension_semantics<parallel>], iteration_bounds = array<i64: 1>, scalar_prefetch = 0 : i64, scratch_operands = 0 : i64, tpu.core_type = #tpu.core_type<tc>, window_params = [{transform_indices = @transform_0, window_bounds = array<i64: 1, 4, 2048>}, {pipeline_mode = #tpu.pipeline_mode<synchronous>, transform_indices = @transform_1, window_bounds = array<i64: 8, 4>}, {pipeline_mode = #tpu.pipeline_mode<synchronous>, transform_indices = @transform_2, window_bounds = array<i64: 8, 1>}, {pipeline_mode = #tpu.pipeline_mode<synchronous>, transform_indices = @transform_3, window_bounds = array<i64: 8, 1>}, {transform_indices = @transform_4, window_bounds = array<i64: 8, 128>}]} {
    %c0 = arith.constant 0 : index
    %c0_0 = arith.constant 0 : index
    %0 = vector.load %arg2[%c0, %c0_0] : memref<8x4xf32, #tpu.memory_space<vmem>>, vector<8x1xf32>
    %c0_1 = arith.constant 0 : index
    %c0_2 = arith.constant 0 : index
    %c0_3 = arith.constant 0 : index
    %1 = vector.load %arg1[%c0_1, %c0_2, %c0_3] : memref<1x4x2048xbf16, #tpu.memory_space<vmem>>, vector<1x1x2048xbf16>
    %2 = vector.shape_cast %1 : vector<1x1x2048xbf16> to vector<1x2048xbf16>
    %3 = arith.extf %2 : vector<1x2048xbf16> to vector<1x2048xf32>
    %4 = vector.broadcast %0 : vector<8x1xf32> to vector<8x2048xf32>
    %5 = vector.broadcast %3 : vector<1x2048xf32> to vector<8x2048xf32>
    %6 = arith.mulf %4, %5 : vector<8x2048xf32>
    %c0_4 = arith.constant 0 : index
    %c1 = arith.constant 1 : index
    %7 = vector.load %arg2[%c0_4, %c1] : memref<8x4xf32, #tpu.memory_space<vmem>>, vector<8x1xf32>
    %c0_5 = arith.constant 0 : index
    %c1_6 = arith.constant 1 : index
    %c0_7 = arith.constant 0 : index
    %8 = vector.load %arg1[%c0_5, %c1_6, %c0_7] : memref<1x4x2048xbf16, #tpu.memory_space<vmem>>, vector<1x1x2048xbf16>
    %9 = vector.shape_cast %8 : vector<1x1x2048xbf16> to vector<1x2048xbf16>
    %10 = arith.extf %9 : vector<1x2048xbf16> to vector<1x2048xf32>
    %11 = vector.broadcast %7 : vector<8x1xf32> to vector<8x2048xf32>
    %12 = vector.broadcast %10 : vector<1x2048xf32> to vector<8x2048xf32>
    %13 = arith.mulf %11, %12 : vector<8x2048xf32>
    %14 = arith.addf %6, %13 : vector<8x2048xf32>
    %c0_8 = arith.constant 0 : index
    %c2 = arith.constant 2 : index
    %15 = vector.load %arg2[%c0_8, %c2] : memref<8x4xf32, #tpu.memory_space<vmem>>, vector<8x1xf32>
    %c0_9 = arith.constant 0 : index
    %c2_10 = arith.constant 2 : index
    %c0_11 = arith.constant 0 : index
    %16 = vector.load %arg1[%c0_9, %c2_10, %c0_11] : memref<1x4x2048xbf16, #tpu.memory_space<vmem>>, vector<1x1x2048xbf16>
    %17 = vector.shape_cast %16 : vector<1x1x2048xbf16> to vector<1x2048xbf16>
    %18 = arith.extf %17 : vector<1x2048xbf16> to vector<1x2048xf32>
    %19 = vector.broadcast %15 : vector<8x1xf32> to vector<8x2048xf32>
    %20 = vector.broadcast %18 : vector<1x2048xf32> to vector<8x2048xf32>
    %21 = arith.mulf %19, %20 : vector<8x2048xf32>
    %22 = arith.addf %14, %21 : vector<8x2048xf32>
    %c0_12 = arith.constant 0 : index
    %c3 = arith.constant 3 : index
    %23 = vector.load %arg2[%c0_12, %c3] : memref<8x4xf32, #tpu.memory_space<vmem>>, vector<8x1xf32>
    %c0_13 = arith.constant 0 : index
    %c3_14 = arith.constant 3 : index
    %c0_15 = arith.constant 0 : index
    %24 = vector.load %arg1[%c0_13, %c3_14, %c0_15] : memref<1x4x2048xbf16, #tpu.memory_space<vmem>>, vector<1x1x2048xbf16>
    %25 = vector.shape_cast %24 : vector<1x1x2048xbf16> to vector<1x2048xbf16>
    %26 = arith.extf %25 : vector<1x2048xbf16> to vector<1x2048xf32>
    %27 = vector.broadcast %23 : vector<8x1xf32> to vector<8x2048xf32>
    %28 = vector.broadcast %26 : vector<1x2048xf32> to vector<8x2048xf32>
    %29 = arith.mulf %27, %28 : vector<8x2048xf32>
    %30 = arith.addf %22, %29 : vector<8x2048xf32>
    %c0_16 = arith.constant 0 : index
    %c0_17 = arith.constant 0 : index
    %31 = vector.load %arg3[%c0_16, %c0_17] : memref<8x1xf32, #tpu.memory_space<vmem>>, vector<8x1xf32>
    %32 = vector.broadcast %31 : vector<8x1xf32> to vector<8x2048xf32>
    %33 = arith.mulf %30, %32 : vector<8x2048xf32>
    %c0_18 = arith.constant 0 : index
    %c0_19 = arith.constant 0 : index
    %34 = vector.load %arg4[%c0_18, %c0_19] : memref<8x1xf32, #tpu.memory_space<vmem>>, vector<8x1xf32>
    %35 = vector.broadcast %34 : vector<8x1xf32> to vector<8x2048xf32>
    %36 = arith.addf %33, %35 : vector<8x2048xf32>
    %cst = arith.constant 0.000000e+00 : f32
    %37 = vector.broadcast %cst : f32 to vector<8x2048xf32>
    %38 = arith.cmpf ogt, %36, %37 : vector<8x2048xf32>
    %cst_20 = arith.constant 0.00999999977 : f32
    %39 = vector.broadcast %cst_20 : f32 to vector<8x2048xf32>
    %40 = arith.mulf %39, %36 : vector<8x2048xf32>
    %41 = arith.select %38, %36, %40 : vector<8x2048xi1>, vector<8x2048xf32>
    %42 = vector.extract_strided_slice %41 {offsets = [0, 0], sizes = [8, 128], strides = [1, 1]} : vector<8x2048xf32> to vector<8x128xf32>
    %43 = vector.extract_strided_slice %41 {offsets = [0, 128], sizes = [8, 128], strides = [1, 1]} : vector<8x2048xf32> to vector<8x128xf32>
    %44 = arith.addf %42, %43 : vector<8x128xf32>
    %45 = vector.extract_strided_slice %41 {offsets = [0, 256], sizes = [8, 128], strides = [1, 1]} : vector<8x2048xf32> to vector<8x128xf32>
    %46 = arith.addf %44, %45 : vector<8x128xf32>
    %47 = vector.extract_strided_slice %41 {offsets = [0, 384], sizes = [8, 128], strides = [1, 1]} : vector<8x2048xf32> to vector<8x128xf32>
    %48 = arith.addf %46, %47 : vector<8x128xf32>
    %49 = vector.extract_strided_slice %41 {offsets = [0, 512], sizes = [8, 128], strides = [1, 1]} : vector<8x2048xf32> to vector<8x128xf32>
    %50 = arith.addf %48, %49 : vector<8x128xf32>
    %51 = vector.extract_strided_slice %41 {offsets = [0, 640], sizes = [8, 128], strides = [1, 1]} : vector<8x2048xf32> to vector<8x128xf32>
    %52 = arith.addf %50, %51 : vector<8x128xf32>
    %53 = vector.extract_strided_slice %41 {offsets = [0, 768], sizes = [8, 128], strides = [1, 1]} : vector<8x2048xf32> to vector<8x128xf32>
    %54 = arith.addf %52, %53 : vector<8x128xf32>
    %55 = vector.extract_strided_slice %41 {offsets = [0, 896], sizes = [8, 128], strides = [1, 1]} : vector<8x2048xf32> to vector<8x128xf32>
    %56 = arith.addf %54, %55 : vector<8x128xf32>
    %57 = vector.extract_strided_slice %41 {offsets = [0, 1024], sizes = [8, 128], strides = [1, 1]} : vector<8x2048xf32> to vector<8x128xf32>
    %58 = arith.addf %56, %57 : vector<8x128xf32>
    %59 = vector.extract_strided_slice %41 {offsets = [0, 1152], sizes = [8, 128], strides = [1, 1]} : vector<8x2048xf32> to vector<8x128xf32>
    %60 = arith.addf %58, %59 : vector<8x128xf32>
    %61 = vector.extract_strided_slice %41 {offsets = [0, 1280], sizes = [8, 128], strides = [1, 1]} : vector<8x2048xf32> to vector<8x128xf32>
    %62 = arith.addf %60, %61 : vector<8x128xf32>
    %63 = vector.extract_strided_slice %41 {offsets = [0, 1408], sizes = [8, 128], strides = [1, 1]} : vector<8x2048xf32> to vector<8x128xf32>
    %64 = arith.addf %62, %63 : vector<8x128xf32>
    %65 = vector.extract_strided_slice %41 {offsets = [0, 1536], sizes = [8, 128], strides = [1, 1]} : vector<8x2048xf32> to vector<8x128xf32>
    %66 = arith.addf %64, %65 : vector<8x128xf32>
    %67 = vector.extract_strided_slice %41 {offsets = [0, 1664], sizes = [8, 128], strides = [1, 1]} : vector<8x2048xf32> to vector<8x128xf32>
    %68 = arith.addf %66, %67 : vector<8x128xf32>
    %69 = vector.extract_strided_slice %41 {offsets = [0, 1792], sizes = [8, 128], strides = [1, 1]} : vector<8x2048xf32> to vector<8x128xf32>
    %70 = arith.addf %68, %69 : vector<8x128xf32>
    %71 = vector.extract_strided_slice %41 {offsets = [0, 1920], sizes = [8, 128], strides = [1, 1]} : vector<8x2048xf32> to vector<8x128xf32>
    %72 = arith.addf %70, %71 : vector<8x128xf32>
    %c0_21 = arith.constant 0 : index
    %c0_22 = arith.constant 0 : index
    %73 = vector.load %arg5[%c0_21, %c0_22] : memref<8x128xf32, #tpu.memory_space<vmem>>, vector<8x128xf32>
    tpu.vector_store %arg5[%c0_21, %c0_22], %72 {strides = array<i32>} : memref<8x128xf32, #tpu.memory_space<vmem>>, vector<8x128xf32>,
    return
  }
  func.func @transform_0(%arg0: i32) -> (i32, i32, i32) {
    %c0_i32 = arith.constant 0 : i32
    %c0_i32_0 = arith.constant 0 : i32
    %c0_i32_1 = arith.constant 0 : i32
    return %arg0, %c0_i32, %c0_i32_0 : i32, i32, i32
  }
  func.func @transform_1(%arg0: i32) -> (i32, i32) {
    %c0_i32 = arith.constant 0 : i32
    %c0_i32_0 = arith.constant 0 : i32
    %c0_i32_1 = arith.constant 0 : i32
    return %c0_i32, %c0_i32_0 : i32, i32
  }
  func.func @transform_2(%arg0: i32) -> (i32, i32) {
    %c0_i32 = arith.constant 0 : i32
    %c0_i32_0 = arith.constant 0 : i32
    %c0_i32_1 = arith.constant 0 : i32
    return %c0_i32, %c0_i32_0 : i32, i32
  }
  func.func @transform_3(%arg0: i32) -> (i32, i32) {
    %c0_i32 = arith.constant 0 : i32
    %c0_i32_0 = arith.constant 0 : i32
    %c0_i32_1 = arith.constant 0 : i32
    return %c0_i32, %c0_i32_0 : i32, i32
  }
  func.func @transform_4(%arg0: i32) -> (i32, i32) {
    %c0_i32 = arith.constant 0 : i32
    %c0_i32_0 = arith.constant 0 : i32
    return %c0_i32, %arg0 : i32, i32
  }
}

</mosaic_0001>

<llo_original>
// kernel: downsample_forward.1
$region0: #{downsample_forward.1}
  #allocation0 [shape = 'u32[]', space=smem, size = 0x4, offset = 0x4, fixed_abs, tag = 'smem constant byte address 0x4 - core index']
  #allocation1 [shape = 'u32[144,128]{1,0:T(1,128)}', space=vmem, size = 0x12000, scoped, tag = 'internal scratch']
  %s0 = inlined_call_operand.vmem [shape: bf16[1,4,2048], index: 0, kind: input, shape index: {}]
  %s1 = inlined_call_operand.vmem [shape: f32[8,4], index: 1, kind: input, shape index: {}]
  %s2 = inlined_call_operand.vmem [shape: f32[8,1], index: 2, kind: input, shape index: {}]
  %s3 = inlined_call_operand.vmem [shape: f32[8,1], index: 3, kind: input, shape index: {}]
  %s4 = inlined_call_operand.vmem [shape: f32[8,128], index: 4, kind: output, shape index: {}]
  %s5 = sld [smem:[#allocation0]]
  $region26: #{downsample_forward.1} parent=0
    _
  %s7 = ssub.s32 1, %s5
  %s8 = scalar_select 0, %s7, %s5
  // Predicated region
  $region2: #{downsample_forward.1} parent=0 // pred_check
    _
  $region3: #{downsample_forward.1} parent=0 // pred_check_branch
    %10 = sbr.rel (0) target = $region5
  $region4: #{downsample_forward.1} parent=0 // pred_region
    _
  $region5: #{downsample_forward.1} parent=0 // pred_fallthru
    _
  // Predicated region
  $region6: #{downsample_forward.1} parent=0 // pred_check
    _
  $region7: #{downsample_forward.1} parent=0 // pred_check_branch
    %12 = sbr.rel (0) target = $region9
  $region8: #{downsample_forward.1} parent=0 // pred_region
    _
  $region9: #{downsample_forward.1} parent=0 // pred_fallthru
    _
  // Predicated region
  $region10: #{downsample_forward.1} parent=0 // pred_check
    _
  $region11: #{downsample_forward.1} parent=0 // pred_check_branch
    %14 = sbr.rel (0) target = $region13
  $region12: #{downsample_forward.1} parent=0 // pred_region
    _
  $region13: #{downsample_forward.1} parent=0 // pred_fallthru
    _
  // Predicated region
  $region14: #{downsample_forward.1} parent=0 // pred_check
    _
  $region15: #{downsample_forward.1} parent=0 // pred_check_branch
    %16 = sbr.rel (0) target = $region17
  $region16: #{downsample_forward.1} parent=0 // pred_region
    _
  $region17: #{downsample_forward.1} parent=0 // pred_fallthru
    _
  %v17 = vld [vmem:[%s1] sm:$0xff]
  %v18 = vld [vmem:[%s0] sm:$0x55]
  %v19 = vld [vmem:[%s0 + $0x8] sm:$0x55]
  %v20 = vld [vmem:[%s0 + $0x10] sm:$0x55]
  %v21 = vld [vmem:[%s0 + $0x18] sm:$0x55]
  %v22 = vunpack.c.l.bf16 %v18
  %v23 = vunpack.c.h.bf16 %v18
  %v24 = vunpack.c.l.bf16 %v19
  %v25 = vunpack.c.h.bf16 %v19
  %v26 = vunpack.c.l.bf16 %v20
  %v27 = vunpack.c.h.bf16 %v20
  %v28 = vunpack.c.l.bf16 %v21
  %v29 = vunpack.c.h.bf16 %v21
  %31 = vset.pattern.permute.xlu0 0
  %32 = vperm.xlu0 %31, %v17
  %v33 = vpop.permute.xlu0 %32
  %v43 = vlaneseq
  %v44 = vshrl.u32 %v43, 7
  %v45 = vsub.s32 0, %v44
  %v46 = vrot.slane %v22, %v45
  %v47 = vlaneseq
  %v48 = vshrl.u32 %v47, 7
  %v49 = vsub.s32 4, %v48
  %v50 = vrot.slane %v22, %v49
  %v51 = vlaneseq
  %v52 = vshrl.u32 %v51, 7
  %v53 = vsub.s32 0, %v52
  %v54 = vrot.slane %v23, %v53
  %v55 = vlaneseq
  %v56 = vshrl.u32 %v55, 7
  %v57 = vsub.s32 4, %v56
  %v58 = vrot.slane %v23, %v57
  %v59 = vlaneseq
  %v60 = vshrl.u32 %v59, 7
  %v61 = vsub.s32 0, %v60
  %v62 = vrot.slane %v24, %v61
  %v63 = vlaneseq
  %v64 = vshrl.u32 %v63, 7
  %v65 = vsub.s32 4, %v64
  %v66 = vrot.slane %v24, %v65
  %v67 = vlaneseq
  %v68 = vshrl.u32 %v67, 7
  %v69 = vsub.s32 0, %v68
  %v70 = vrot.slane %v25, %v69
  %v71 = vlaneseq
  %v72 = vshrl.u32 %v71, 7
  %v73 = vsub.s32 4, %v72
  %v74 = vrot.slane %v25, %v73
  %v75 = vlaneseq
  %v76 = vshrl.u32 %v75, 7
  %v77 = vsub.s32 0, %v76
  %v78 = vrot.slane %v26, %v77
  %v79 = vlaneseq
  %v80 = vshrl.u32 %v79, 7
  %v81 = vsub.s32 4, %v80
  %v82 = vrot.slane %v26, %v81
  %v83 = vlaneseq
  %v84 = vshrl.u32 %v83, 7
  %v85 = vsub.s32 0, %v84
  %v86 = vrot.slane %v27, %v85
  %v87 = vlaneseq
  %v88 = vshrl.u32 %v87, 7
  %v89 = vsub.s32 4, %v88
  %v90 = vrot.slane %v27, %v89
  %v91 = vlaneseq
  %v92 = vshrl.u32 %v91, 7
  %v93 = vsub.s32 0, %v92
  %v94 = vrot.slane %v28, %v93
  %v95 = vlaneseq
  %v96 = vshrl.u32 %v95, 7
  %v97 = vsub.s32 4, %v96
  %v98 = vrot.slane %v28, %v97
  %v99 = vlaneseq
  %v100 = vshrl.u32 %v99, 7
  %v101 = vsub.s32 0, %v100
  %v102 = vrot.slane %v29, %v101
  %v103 = vlaneseq
  %v104 = vshrl.u32 %v103, 7
  %v105 = vsub.s32 4, %v104
  %v106 = vrot.slane %v29, %v105
  %v123 = vlaneseq
  %v124 = vshrl.u32 %v123, 7
  %v125 = vsub.s32 0, %v124
  %v126 = vrot.slane %v46, %v125
  %v127 = vlaneseq
  %v128 = vshrl.u32 %v127, 7
  %v129 = vsub.s32 0, %v128
  %v130 = vrot.slane %v50, %v129
  %v131 = vlaneseq
  %v132 = vshrl.u32 %v131, 7
  %v133 = vsub.s32 0, %v132
  %v134 = vrot.slane %v54, %v133
  %v135 = vlaneseq
  %v136 = vshrl.u32 %v135, 7
  %v137 = vsub.s32 0, %v136
  %v138 = vrot.slane %v58, %v137
  %v139 = vlaneseq
  %v140 = vshrl.u32 %v139, 7
  %v141 = vsub.s32 0, %v140
  %v142 = vrot.slane %v62, %v141
  %v143 = vlaneseq
  %v144 = vshrl.u32 %v143, 7
  %v145 = vsub.s32 0, %v144
  %v146 = vrot.slane %v66, %v145
  %v147 = vlaneseq
  %v148 = vshrl.u32 %v147, 7
  %v149 = vsub.s32 0, %v148
  %v150 = vrot.slane %v70, %v149
  %v151 = vlaneseq
  %v152 = vshrl.u32 %v151, 7
  %v153 = vsub.s32 0, %v152
  %v154 = vrot.slane %v74, %v153
  %v155 = vlaneseq
  %v156 = vshrl.u32 %v155, 7
  %v157 = vsub.s32 0, %v156
  %v158 = vrot.slane %v78, %v157
  %v159 = vlaneseq
  %v160 = vshrl.u32 %v159, 7
  %v161 = vsub.s32 0, %v160
  %v162 = vrot.slane %v82, %v161
  %v163 = vlaneseq
  %v164 = vshrl.u32 %v163, 7
  %v165 = vsub.s32 0, %v164
  %v166 = vrot.slane %v86, %v165
  %v167 = vlaneseq
  %v168 = vshrl.u32 %v167, 7
  %v169 = vsub.s32 0, %v168
  %v170 = vrot.slane %v90, %v169
  %v171 = vlaneseq
  %v172 = vshrl.u32 %v171, 7
  %v173 = vsub.s32 0, %v172
  %v174 = vrot.slane %v94, %v173
  %v175 = vlaneseq
  %v176 = vshrl.u32 %v175, 7
  %v177 = vsub.s32 0, %v176
  %v178 = vrot.slane %v98, %v177
  %v179 = vlaneseq
  %v180 = vshrl.u32 %v179, 7
  %v181 = vsub.s32 0, %v180
  %v182 = vrot.slane %v102, %v181
  %v183 = vlaneseq
  %v184 = vshrl.u32 %v183, 7
  %v185 = vsub.s32 0, %v184
  %v186 = vrot.slane %v106, %v185
  %v187 = vmul.f32 %v33, %v126
  %v188 = vmul.f32 %v33, %v130
  %v189 = vmul.f32 %v33, %v134
  %v190 = vmul.f32 %v33, %v138
  %v191 = vmul.f32 %v33, %v142
  %v192 = vmul.f32 %v33, %v146
  %v193 = vmul.f32 %v33, %v150
  %v194 = vmul.f32 %v33, %v154
  %v195 = vmul.f32 %v33, %v158
  %v196 = vmul.f32 %v33, %v162
  %v197 = vmul.f32 %v33, %v166
  %v198 = vmul.f32 %v33, %v170
  %v199 = vmul.f32 %v33, %v174
  %v200 = vmul.f32 %v33, %v178
  %v201 = vmul.f32 %v33, %v182
  %v202 = vmul.f32 %v33, %v186
  %203 = vset.pattern.permute.xlu0 1
  %204 = vperm.xlu0 %203, %v17
  %v205 = vpop.permute.xlu0 %204
  %v207 = vlaneseq
  %v208 = vshrl.u32 %v207, 7
  %v209 = vsub.s32 1, %v208
  %v210 = vrot.slane %v22, %v209
  %v211 = vlaneseq
  %v212 = vshrl.u32 %v211, 7
  %v213 = vsub.s32 5, %v212
  %v214 = vrot.slane %v22, %v213
  %v215 = vlaneseq
  %v216 = vshrl.u32 %v215, 7
  %v217 = vsub.s32 1, %v216
  %v218 = vrot.slane %v23, %v217
  %v219 = vlaneseq
  %v220 = vshrl.u32 %v219, 7
  %v221 = vsub.s32 5, %v220
  %v222 = vrot.slane %v23, %v221
  %v223 = vlaneseq
  %v224 = vshrl.u32 %v223, 7
  %v225 = vsub.s32 1, %v224
  %v226 = vrot.slane %v24, %v225
  %v227 = vlaneseq
  %v228 = vshrl.u32 %v227, 7
  %v229 = vsub.s32 5, %v228
  %v230 = vrot.slane %v24, %v229
  %v231 = vlaneseq
  %v232 = vshrl.u32 %v231, 7
  %v233 = vsub.s32 1, %v232
  %v234 = vrot.slane %v25, %v233
  %v235 = vlaneseq
  %v236 = vshrl.u32 %v235, 7
  %v237 = vsub.s32 5, %v236
  %v238 = vrot.slane %v25, %v237
  %v239 = vlaneseq
  %v240 = vshrl.u32 %v239, 7
  %v241 = vsub.s32 1, %v240
  %v242 = vrot.slane %v26, %v241
  %v243 = vlaneseq
  %v244 = vshrl.u32 %v243, 7
  %v245 = vsub.s32 5, %v244
  %v246 = vrot.slane %v26, %v245
  %v247 = vlaneseq
  %v248 = vshrl.u32 %v247, 7
  %v249 = vsub.s32 1, %v248
  %v250 = vrot.slane %v27, %v249
  %v251 = vlaneseq
  %v252 = vshrl.u32 %v251, 7
  %v253 = vsub.s32 5, %v252
  %v254 = vrot.slane %v27, %v253
  %v255 = vlaneseq
  %v256 = vshrl.u32 %v255, 7
  %v257 = vsub.s32 1, %v256
  %v258 = vrot.slane %v28, %v257
  %v259 = vlaneseq
  %v260 = vshrl.u32 %v259, 7
  %v261 = vsub.s32 5, %v260
  %v262 = vrot.slane %v28, %v261
  %v263 = vlaneseq
  %v264 = vshrl.u32 %v263, 7
  %v265 = vsub.s32 1, %v264
  %v266 = vrot.slane %v29, %v265
  %v267 = vlaneseq
  %v268 = vshrl.u32 %v267, 7
  %v269 = vsub.s32 5, %v268
  %v270 = vrot.slane %v29, %v269
  %v287 = vlaneseq
  %v288 = vshrl.u32 %v287, 7
  %v289 = vsub.s32 1, %v288
  %v290 = vrot.slane %v210, %v289
  %v291 = vlaneseq
  %v292 = vshrl.u32 %v291, 7
  %v293 = vsub.s32 1, %v292
  %v294 = vrot.slane %v214, %v293
  %v295 = vlaneseq
  %v296 = vshrl.u32 %v295, 7
  %v297 = vsub.s32 1, %v296
  %v298 = vrot.slane %v218, %v297
  %v299 = vlaneseq
  %v300 = vshrl.u32 %v299, 7
  %v301 = vsub.s32 1, %v300
  %v302 = vrot.slane %v222, %v301
  %v303 = vlaneseq
  %v304 = vshrl.u32 %v303, 7
  %v305 = vsub.s32 1, %v304
  %v306 = vrot.slane %v226, %v305
  %v307 = vlaneseq
  %v308 = vshrl.u32 %v307, 7
  %v309 = vsub.s32 1, %v308
  %v310 = vrot.slane %v230, %v309
  %v311 = vlaneseq
  %v312 = vshrl.u32 %v311, 7
  %v313 = vsub.s32 1, %v312
  %v314 = vrot.slane %v234, %v313
  %v315 = vlaneseq
  %v316 = vshrl.u32 %v315, 7
  %v317 = vsub.s32 1, %v316
  %v318 = vrot.slane %v238, %v317
  %v319 = vlaneseq
  %v320 = vshrl.u32 %v319, 7
  %v321 = vsub.s32 1, %v320
  %v322 = vrot.slane %v242, %v321
  %v323 = vlaneseq
  %v324 = vshrl.u32 %v323, 7
  %v325 = vsub.s32 1, %v324
  %v326 = vrot.slane %v246, %v325
  %v327 = vlaneseq
  %v328 = vshrl.u32 %v327, 7
  %v329 = vsub.s32 1, %v328
  %v330 = vrot.slane %v250, %v329
  %v331 = vlaneseq
  %v332 = vshrl.u32 %v331, 7
  %v333 = vsub.s32 1, %v332
  %v334 = vrot.slane %v254, %v333
  %v335 = vlaneseq
  %v336 = vshrl.u32 %v335, 7
  %v337 = vsub.s32 1, %v336
  %v338 = vrot.slane %v258, %v337
  %v339 = vlaneseq
  %v340 = vshrl.u32 %v339, 7
  %v341 = vsub.s32 1, %v340
  %v342 = vrot.slane %v262, %v341
  %v343 = vlaneseq
  %v344 = vshrl.u32 %v343, 7
  %v345 = vsub.s32 1, %v344
  %v346 = vrot.slane %v266, %v345
  %v347 = vlaneseq
  %v348 = vshrl.u32 %v347, 7
  %v349 = vsub.s32 1, %v348
  %v350 = vrot.slane %v270, %v349
  %v351 = vmul.f32 %v205, %v290
  %v352 = vmul.f32 %v205, %v294
  %v353 = vmul.f32 %v205, %v298
  %v354 = vmul.f32 %v205, %v302
  %v355 = vmul.f32 %v205, %v306
  %v356 = vmul.f32 %v205, %v310
  %v357 = vmul.f32 %v205, %v314
  %v358 = vmul.f32 %v205, %v318
  %v359 = vmul.f32 %v205, %v322
  %v360 = vmul.f32 %v205, %v326
  %v361 = vmul.f32 %v205, %v330
  %v362 = vmul.f32 %v205, %v334
  %v363 = vmul.f32 %v205, %v338
  %v364 = vmul.f32 %v205, %v342
  %v365 = vmul.f32 %v205, %v346
  %v366 = vmul.f32 %v205, %v350
  %v367 = vadd.f32 %v187, %v351
  %v368 = vadd.f32 %v188, %v352
  %v369 = vadd.f32 %v189, %v353
  %v370 = vadd.f32 %v190, %v354
  %v371 = vadd.f32 %v191, %v355
  %v372 = vadd.f32 %v192, %v356
  %v373 = vadd.f32 %v193, %v357
  %v374 = vadd.f32 %v194, %v358
  %v375 = vadd.f32 %v195, %v359
  %v376 = vadd.f32 %v196, %v360
  %v377 = vadd.f32 %v197, %v361
  %v378 = vadd.f32 %v198, %v362
  %v379 = vadd.f32 %v199, %v363
  %v380 = vadd.f32 %v200, %v364
  %v381 = vadd.f32 %v201, %v365
  %v382 = vadd.f32 %v202, %v366
  %v383 = vld [vmem:[%s0] sm:$0xaa]
  %v384 = vld [vmem:[%s0 + $0x8] sm:$0xaa]
  %v385 = vld [vmem:[%s0 + $0x10] sm:$0xaa]
  %v386 = vld [vmem:[%s0 + $0x18] sm:$0xaa]
  %v387 = vunpack.c.l.bf16 %v383
  %v388 = vunpack.c.h.bf16 %v383
  %v389 = vunpack.c.l.bf16 %v384
  %v390 = vunpack.c.h.bf16 %v384
  %v391 = vunpack.c.l.bf16 %v385
  %v392 = vunpack.c.h.bf16 %v385
  %v393 = vunpack.c.l.bf16 %v386
  %v394 = vunpack.c.h.bf16 %v386
  %395 = vset.pattern.permute.xlu0 2
  %396 = vperm.xlu0 %395, %v17
  %v397 = vpop.permute.xlu0 %396
  %v407 = vlaneseq
  %v408 = vshrl.u32 %v407, 7
  %v409 = vsub.s32 2, %v408
  %v410 = vrot.slane %v387, %v409
  %v411 = vlaneseq
  %v412 = vshrl.u32 %v411, 7
  %v413 = vsub.s32 6, %v412
  %v414 = vrot.slane %v387, %v413
  %v415 = vlaneseq
  %v416 = vshrl.u32 %v415, 7
  %v417 = vsub.s32 2, %v416
  %v418 = vrot.slane %v388, %v417
  %v419 = vlaneseq
  %v420 = vshrl.u32 %v419, 7
  %v421 = vsub.s32 6, %v420
  %v422 = vrot.slane %v388, %v421
  %v423 = vlaneseq
  %v424 = vshrl.u32 %v423, 7
  %v425 = vsub.s32 2, %v424
  %v426 = vrot.slane %v389, %v425
  %v427 = vlaneseq
  %v428 = vshrl.u32 %v427, 7
  %v429 = vsub.s32 6, %v428
  %v430 = vrot.slane %v389, %v429
  %v431 = vlaneseq
  %v432 = vshrl.u32 %v431, 7
  %v433 = vsub.s32 2, %v432
  %v434 = vrot.slane %v390, %v433
  %v435 = vlaneseq
  %v436 = vshrl.u32 %v435, 7
  %v437 = vsub.s32 6, %v436
  %v438 = vrot.slane %v390, %v437
  %v439 = vlaneseq
  %v440 = vshrl.u32 %v439, 7
  %v441 = vsub.s32 2, %v440
  %v442 = vrot.slane %v391, %v441
  %v443 = vlaneseq
  %v444 = vshrl.u32 %v443, 7
  %v445 = vsub.s32 6, %v444
  %v446 = vrot.slane %v391, %v445
  %v447 = vlaneseq
  %v448 = vshrl.u32 %v447, 7
  %v449 = vsub.s32 2, %v448
  %v450 = vrot.slane %v392, %v449
  %v451 = vlaneseq
  %v452 = vshrl.u32 %v451, 7
  %v453 = vsub.s32 6, %v452
  %v454 = vrot.slane %v392, %v453
  %v455 = vlaneseq
  %v456 = vshrl.u32 %v455, 7
  %v457 = vsub.s32 2, %v456
  %v458 = vrot.slane %v393, %v457
  %v459 = vlaneseq
  %v460 = vshrl.u32 %v459, 7
  %v461 = vsub.s32 6, %v460
  %v462 = vrot.slane %v393, %v461
  %v463 = vlaneseq
  %v464 = vshrl.u32 %v463, 7
  %v465 = vsub.s32 2, %v464
  %v466 = vrot.slane %v394, %v465
  %v467 = vlaneseq
  %v468 = vshrl.u32 %v467, 7
  %v469 = vsub.s32 6, %v468
  %v470 = vrot.slane %v394, %v469
  %v487 = vlaneseq
  %v488 = vshrl.u32 %v487, 7
  %v489 = vsub.s32 2, %v488
  %v490 = vrot.slane %v410, %v489
  %v491 = vlaneseq
  %v492 = vshrl.u32 %v491, 7
  %v493 = vsub.s32 2, %v492
  %v494 = vrot.slane %v414, %v493
  %v495 = vlaneseq
  %v496 = vshrl.u32 %v495, 7
  %v497 = vsub.s32 2, %v496
  %v498 = vrot.slane %v418, %v497
  %v499 = vlaneseq
  %v500 = vshrl.u32 %v499, 7
  %v501 = vsub.s32 2, %v500
  %v502 = vrot.slane %v422, %v501
  %v503 = vlaneseq
  %v504 = vshrl.u32 %v503, 7
  %v505 = vsub.s32 2, %v504
  %v506 = vrot.slane %v426, %v505
  %v507 = vlaneseq
  %v508 = vshrl.u32 %v507, 7
  %v509 = vsub.s32 2, %v508
  %v510 = vrot.slane %v430, %v509
  %v511 = vlaneseq
  %v512 = vshrl.u32 %v511, 7
  %v513 = vsub.s32 2, %v512
  %v514 = vrot.slane %v434, %v513
  %v515 = vlaneseq
  %v516 = vshrl.u32 %v515, 7
  %v517 = vsub.s32 2, %v516
  %v518 = vrot.slane %v438, %v517
  %v519 = vlaneseq
  %v520 = vshrl.u32 %v519, 7
  %v521 = vsub.s32 2, %v520
  %v522 = vrot.slane %v442, %v521
  %v523 = vlaneseq
  %v524 = vshrl.u32 %v523, 7
  %v525 = vsub.s32 2, %v524
  %v526 = vrot.slane %v446, %v525
  %v527 = vlaneseq
  %v528 = vshrl.u32 %v527, 7
  %v529 = vsub.s32 2, %v528
  %v530 = vrot.slane %v450, %v529
  %v531 = vlaneseq
  %v532 = vshrl.u32 %v531, 7
  %v533 = vsub.s32 2, %v532
  %v534 = vrot.slane %v454, %v533
  %v535 = vlaneseq
  %v536 = vshrl.u32 %v535, 7
  %v537 = vsub.s32 2, %v536
  %v538 = vrot.slane %v458, %v537
  %v539 = vlaneseq
  %v540 = vshrl.u32 %v539, 7
  %v541 = vsub.s32 2, %v540
  %v542 = vrot.slane %v462, %v541
  %v543 = vlaneseq
  %v544 = vshrl.u32 %v543, 7
  %v545 = vsub.s32 2, %v544
  %v546 = vrot.slane %v466, %v545
  %v547 = vlaneseq
  %v548 = vshrl.u32 %v547, 7
  %v549 = vsub.s32 2, %v548
  %v550 = vrot.slane %v470, %v549
  %v551 = vmul.f32 %v397, %v490
  %v552 = vmul.f32 %v397, %v494
  %v553 = vmul.f32 %v397, %v498
  %v554 = vmul.f32 %v397, %v502
  %v555 = vmul.f32 %v397, %v506
  %v556 = vmul.f32 %v397, %v510
  %v557 = vmul.f32 %v397, %v514
  %v558 = vmul.f32 %v397, %v518
  %v559 = vmul.f32 %v397, %v522
  %v560 = vmul.f32 %v397, %v526
  %v561 = vmul.f32 %v397, %v530
  %v562 = vmul.f32 %v397, %v534
  %v563 = vmul.f32 %v397, %v538
  %v564 = vmul.f32 %v397, %v542
  %v565 = vmul.f32 %v397, %v546
  %v566 = vmul.f32 %v397, %v550
  %v567 = vadd.f32 %v367, %v551
  %v568 = vadd.f32 %v368, %v552
  %v569 = vadd.f32 %v369, %v553
  %v570 = vadd.f32 %v370, %v554
  %v571 = vadd.f32 %v371, %v555
  %v572 = vadd.f32 %v372, %v556
  %v573 = vadd.f32 %v373, %v557
  %v574 = vadd.f32 %v374, %v558
  %v575 = vadd.f32 %v375, %v559
  %v576 = vadd.f32 %v376, %v560
  %v577 = vadd.f32 %v377, %v561
  %v578 = vadd.f32 %v378, %v562
  %v579 = vadd.f32 %v379, %v563
  %v580 = vadd.f32 %v380, %v564
  %v581 = vadd.f32 %v381, %v565
  %v582 = vadd.f32 %v382, %v566
  %583 = vset.pattern.permute.xlu0 3
  %584 = vperm.xlu0 %583, %v17
  %v585 = vpop.permute.xlu0 %584
  %v587 = vlaneseq
  %v588 = vshrl.u32 %v587, 7
  %v589 = vsub.s32 3, %v588
  %v590 = vrot.slane %v387, %v589
  %v591 = vlaneseq
  %v592 = vshrl.u32 %v591, 7
  %v593 = vsub.s32 7, %v592
  %v594 = vrot.slane %v387, %v593
  %v595 = vlaneseq
  %v596 = vshrl.u32 %v595, 7
  %v597 = vsub.s32 3, %v596
  %v598 = vrot.slane %v388, %v597
  %v599 = vlaneseq
  %v600 = vshrl.u32 %v599, 7
  %v601 = vsub.s32 7, %v600
  %v602 = vrot.slane %v388, %v601
  %v603 = vlaneseq
  %v604 = vshrl.u32 %v603, 7
  %v605 = vsub.s32 3, %v604
  %v606 = vrot.slane %v389, %v605
  %v607 = vlaneseq
  %v608 = vshrl.u32 %v607, 7
  %v609 = vsub.s32 7, %v608
  %v610 = vrot.slane %v389, %v609
  %v611 = vlaneseq
  %v612 = vshrl.u32 %v611, 7
  %v613 = vsub.s32 3, %v612
  %v614 = vrot.slane %v390, %v613
  %v615 = vlaneseq
  %v616 = vshrl.u32 %v615, 7
  %v617 = vsub.s32 7, %v616
  %v618 = vrot.slane %v390, %v617
  %v619 = vlaneseq
  %v620 = vshrl.u32 %v619, 7
  %v621 = vsub.s32 3, %v620
  %v622 = vrot.slane %v391, %v621
  %v623 = vlaneseq
  %v624 = vshrl.u32 %v623, 7
  %v625 = vsub.s32 7, %v624
  %v626 = vrot.slane %v391, %v625
  %v627 = vlaneseq
  %v628 = vshrl.u32 %v627, 7
  %v629 = vsub.s32 3, %v628
  %v630 = vrot.slane %v392, %v629
  %v631 = vlaneseq
  %v632 = vshrl.u32 %v631, 7
  %v633 = vsub.s32 7, %v632
  %v634 = vrot.slane %v392, %v633
  %v635 = vlaneseq
  %v636 = vshrl.u32 %v635, 7
  %v637 = vsub.s32 3, %v636
  %v638 = vrot.slane %v393, %v637
  %v639 = vlaneseq
  %v640 = vshrl.u32 %v639, 7
  %v641 = vsub.s32 7, %v640
  %v642 = vrot.slane %v393, %v641
  %v643 = vlaneseq
  %v644 = vshrl.u32 %v643, 7
  %v645 = vsub.s32 3, %v644
  %v646 = vrot.slane %v394, %v645
  %v647 = vlaneseq
  %v648 = vshrl.u32 %v647, 7
  %v649 = vsub.s32 7, %v648
  %v650 = vrot.slane %v394, %v649
  %v667 = vlaneseq
  %v668 = vshrl.u32 %v667, 7
  %v669 = vsub.s32 3, %v668
  %v670 = vrot.slane %v590, %v669
  %v671 = vlaneseq
  %v672 = vshrl.u32 %v671, 7
  %v673 = vsub.s32 3, %v672
  %v674 = vrot.slane %v594, %v673
  %v675 = vlaneseq
  %v676 = vshrl.u32 %v675, 7
  %v677 = vsub.s32 3, %v676
  %v678 = vrot.slane %v598, %v677
  %v679 = vlaneseq
  %v680 = vshrl.u32 %v679, 7
  %v681 = vsub.s32 3, %v680
  %v682 = vrot.slane %v602, %v681
  %v683 = vlaneseq
  %v684 = vshrl.u32 %v683, 7
  %v685 = vsub.s32 3, %v684
  %v686 = vrot.slane %v606, %v685
  %v687 = vlaneseq
  %v688 = vshrl.u32 %v687, 7
  %v689 = vsub.s32 3, %v688
  %v690 = vrot.slane %v610, %v689
  %v691 = vlaneseq
  %v692 = vshrl.u32 %v691, 7
  %v693 = vsub.s32 3, %v692
  %v694 = vrot.slane %v614, %v693
  %v695 = vlaneseq
  %v696 = vshrl.u32 %v695, 7
  %v697 = vsub.s32 3, %v696
  %v698 = vrot.slane %v618, %v697
  %v699 = vlaneseq
  %v700 = vshrl.u32 %v699, 7
  %v701 = vsub.s32 3, %v700
  %v702 = vrot.slane %v622, %v701
  %v703 = vlaneseq
  %v704 = vshrl.u32 %v703, 7
  %v705 = vsub.s32 3, %v704
  %v706 = vrot.slane %v626, %v705
  %v707 = vlaneseq
  %v708 = vshrl.u32 %v707, 7
  %v709 = vsub.s32 3, %v708
  %v710 = vrot.slane %v630, %v709
  %v711 = vlaneseq
  %v712 = vshrl.u32 %v711, 7
  %v713 = vsub.s32 3, %v712
  %v714 = vrot.slane %v634, %v713
  %v715 = vlaneseq
  %v716 = vshrl.u32 %v715, 7
  %v717 = vsub.s32 3, %v716
  %v718 = vrot.slane %v638, %v717
  %v719 = vlaneseq
  %v720 = vshrl.u32 %v719, 7
  %v721 = vsub.s32 3, %v720
  %v722 = vrot.slane %v642, %v721
  %v723 = vlaneseq
  %v724 = vshrl.u32 %v723, 7
  %v725 = vsub.s32 3, %v724
  %v726 = vrot.slane %v646, %v725
  %v727 = vlaneseq
  %v728 = vshrl.u32 %v727, 7
  %v729 = vsub.s32 3, %v728
  %v730 = vrot.slane %v650, %v729
  %v731 = vmul.f32 %v585, %v670
  %v732 = vmul.f32 %v585, %v674
  %v733 = vmul.f32 %v585, %v678
  %v734 = vmul.f32 %v585, %v682
  %v735 = vmul.f32 %v585, %v686
  %v736 = vmul.f32 %v585, %v690
  %v737 = vmul.f32 %v585, %v694
  %v738 = vmul.f32 %v585, %v698
  %v739 = vmul.f32 %v585, %v702
  %v740 = vmul.f32 %v585, %v706
  %v741 = vmul.f32 %v585, %v710
  %v742 = vmul.f32 %v585, %v714
  %v743 = vmul.f32 %v585, %v718
  %v744 = vmul.f32 %v585, %v722
  %v745 = vmul.f32 %v585, %v726
  %v746 = vmul.f32 %v585, %v730
  %v747 = vadd.f32 %v567, %v731
  %v748 = vadd.f32 %v568, %v732
  %v749 = vadd.f32 %v569, %v733
  %v750 = vadd.f32 %v570, %v734
  %v751 = vadd.f32 %v571, %v735
  %v752 = vadd.f32 %v572, %v736
  %v753 = vadd.f32 %v573, %v737
  %v754 = vadd.f32 %v574, %v738
  %v755 = vadd.f32 %v575, %v739
  %v756 = vadd.f32 %v576, %v740
  %v757 = vadd.f32 %v577, %v741
  %v758 = vadd.f32 %v578, %v742
  %v759 = vadd.f32 %v579, %v743
  %v760 = vadd.f32 %v580, %v744
  %v761 = vadd.f32 %v581, %v745
  %v762 = vadd.f32 %v582, %v746
  %v763 = vld [vmem:[%s2] sm:$0xff]
  %765 = vset.pattern.permute.xlu0 0
  %766 = vperm.xlu0 %765, %v763
  %v767 = vpop.permute.xlu0 %766
  %v769 = vmul.f32 %v747, %v767
  %v770 = vmul.f32 %v748, %v767
  %v771 = vmul.f32 %v749, %v767
  %v772 = vmul.f32 %v750, %v767
  %v773 = vmul.f32 %v751, %v767
  %v774 = vmul.f32 %v752, %v767
  %v775 = vmul.f32 %v753, %v767
  %v776 = vmul.f32 %v754, %v767
  %v777 = vmul.f32 %v755, %v767
  %v778 = vmul.f32 %v756, %v767
  %v779 = vmul.f32 %v757, %v767
  %v780 = vmul.f32 %v758, %v767
  %v781 = vmul.f32 %v759, %v767
  %v782 = vmul.f32 %v760, %v767
  %v783 = vmul.f32 %v761, %v767
  %v784 = vmul.f32 %v762, %v767
  %v785 = vld [vmem:[%s3] sm:$0xff]
  %787 = vset.pattern.permute.xlu0 0
  %788 = vperm.xlu0 %787, %v785
  %v789 = vpop.permute.xlu0 %788
  %v791 = vadd.f32 %v769, %v789
  %v792 = vadd.f32 %v770, %v789
  %v793 = vadd.f32 %v771, %v789
  %v794 = vadd.f32 %v772, %v789
  %v795 = vadd.f32 %v773, %v789
  %v796 = vadd.f32 %v774, %v789
  %v797 = vadd.f32 %v775, %v789
  %v798 = vadd.f32 %v776, %v789
  %v799 = vadd.f32 %v777, %v789
  %v800 = vadd.f32 %v778, %v789
  %v801 = vadd.f32 %v779, %v789
  %v802 = vadd.f32 %v780, %v789
  %v803 = vadd.f32 %v781, %v789
  %v804 = vadd.f32 %v782, %v789
  %v805 = vadd.f32 %v783, %v789
  %v806 = vadd.f32 %v784, %v789
  %vm807 = vcmp.gt.f32.partialorder %v791, 0.0
  %vm808 = vcmp.gt.f32.partialorder %v792, 0.0
  %vm809 = vcmp.gt.f32.partialorder %v793, 0.0
  %vm810 = vcmp.gt.f32.partialorder %v794, 0.0
  %vm811 = vcmp.gt.f32.partialorder %v795, 0.0
  %vm812 = vcmp.gt.f32.partialorder %v796, 0.0
  %vm813 = vcmp.gt.f32.partialorder %v797, 0.0
  %vm814 = vcmp.gt.f32.partialorder %v798, 0.0
  %vm815 = vcmp.gt.f32.partialorder %v799, 0.0
  %vm816 = vcmp.gt.f32.partialorder %v800, 0.0
  %vm817 = vcmp.gt.f32.partialorder %v801, 0.0
  %vm818 = vcmp.gt.f32.partialorder %v802, 0.0
  %vm819 = vcmp.gt.f32.partialorder %v803, 0.0
  %vm820 = vcmp.gt.f32.partialorder %v804, 0.0
  %vm821 = vcmp.gt.f32.partialorder %v805, 0.0
  %vm822 = vcmp.gt.f32.partialorder %v806, 0.0
  %v823 = vmul.f32 %v791, 0.01
  %v824 = vmul.f32 %v792, 0.01
  %v825 = vmul.f32 %v793, 0.01
  %v826 = vmul.f32 %v794, 0.01
  %v827 = vmul.f32 %v795, 0.01
  %v828 = vmul.f32 %v796, 0.01
  %v829 = vmul.f32 %v797, 0.01
  %v830 = vmul.f32 %v798, 0.01
  %v831 = vmul.f32 %v799, 0.01
  %v832 = vmul.f32 %v800, 0.01
  %v833 = vmul.f32 %v801, 0.01
  %v834 = vmul.f32 %v802, 0.01
  %v835 = vmul.f32 %v803, 0.01
  %v836 = vmul.f32 %v804, 0.01
  %v837 = vmul.f32 %v805, 0.01
  %v838 = vmul.f32 %v806, 0.01
  %v839 = vsel %vm807, %v791, %v823
  %v840 = vsel %vm808, %v792, %v824
  %v841 = vsel %vm809, %v793, %v825
  %v842 = vsel %vm810, %v794, %v826
  %v843 = vsel %vm811, %v795, %v827
  %v844 = vsel %vm812, %v796, %v828
  %v845 = vsel %vm813, %v797, %v829
  %v846 = vsel %vm814, %v798, %v830
  %v847 = vsel %vm815, %v799, %v831
  %v848 = vsel %vm816, %v800, %v832
  %v849 = vsel %vm817, %v801, %v833
  %v850 = vsel %vm818, %v802, %v834
  %v851 = vsel %vm819, %v803, %v835
  %v852 = vsel %vm820, %v804, %v836
  %v853 = vsel %vm821, %v805, %v837
  %v854 = vsel %vm822, %v806, %v838
  %v855 = vadd.f32 %v839, %v840
  %v856 = vadd.f32 %v855, %v841
  %v857 = vadd.f32 %v856, %v842
  %v858 = vadd.f32 %v857, %v843
  %v859 = vadd.f32 %v858, %v844
  %v860 = vadd.f32 %v859, %v845
  %v861 = vadd.f32 %v860, %v846
  %v862 = vadd.f32 %v861, %v847
  %v863 = vadd.f32 %v862, %v848
  %v864 = vadd.f32 %v863, %v849
  %v865 = vadd.f32 %v864, %v850
  %v866 = vadd.f32 %v865, %v851
  %v867 = vadd.f32 %v866, %v852
  %v868 = vadd.f32 %v867, %v853
  %v869 = vadd.f32 %v868, %v854
  %870 = vst [vmem:[%s4] sm:$0xff] %v869
  // Predicated region
  $region18: #{downsample_forward.1} parent=0 // pred_check
    _
  $region19: #{downsample_forward.1} parent=0 // pred_check_branch
    %872 = sbr.rel (0) target = $region21
  $region20: #{downsample_forward.1} parent=0 // pred_region
    _
  $region21: #{downsample_forward.1} parent=0 // pred_fallthru
    _
  // Predicated region
  $region22: #{downsample_forward.1} parent=0 // pred_check
    _
  $region23: #{downsample_forward.1} parent=0 // pred_check_branch
    %874 = sbr.rel (0) target = $region25
  $region24: #{downsample_forward.1} parent=0 // pred_region
    _
  $region25: #{downsample_forward.1} parent=0 // pred_fallthru
    _

</llo_original>
